<compile_context>
chip_gen: v7x
topology: tpu7x:2x2x1
jax: 0.10.0
libtpu: 0.0.40
codegen_flags: <defaults>
</compile_context>

<pallas_src>
import math

import jax
import jax.numpy as jnp
from jax.experimental import pallas as pl
from jax.experimental.pallas import tpu as pltpu

_LANE = 128
_TARGET_TILE_BYTES = 8 * 1024 * 1024   # ~8 MiB per tile: roofline plateau
_VMEM_LIMIT_BYTES = 48 * 1024 * 1024   # 2 arrays x 2 buffers x 8 MiB = 32 MiB < 48 MiB


def _copy_kernel(x_ref, o_ref):
    # Single bulk copy of a lane-dense, fully contiguous 2D block.
    o_ref[...] = x_ref[...]


def _sublane_multiple(itemsize):
    # f32 -> 8, bf16/f16 -> 16, int8/fp8 -> 32 (packed sublane layouts).
    return max(8, 32 // int(itemsize))


def _choose_cols(total, itemsize):
    """Largest multiple of 128 that exactly divides `total` (capped)."""
    max_cols = max(_LANE, min(total, (_TARGET_TILE_BYTES // 8) // int(itemsize)))
    best = None
    c = _LANE
    while c <= max_cols:
        if total % c == 0:
            best = c
        c += _LANE
    return best


def _tiled_copy_2d(x2, tr, tc):
    rows, cols = x2.shape
    grid_r = pl.cdiv(rows, tr)
    grid_c = pl.cdiv(cols, tc)
    if grid_c == 1:
        # Full-lane blocks -> 1-D grid over rows (preferred path).
        grid = (grid_r,)
        in_spec = pl.BlockSpec((tr, tc), lambda i: (i, 0))
        out_spec = pl.BlockSpec((tr, tc), lambda i: (i, 0))
        semantics = ("parallel",)
    else:
        grid = (grid_r, grid_c)
        in_spec = pl.BlockSpec((tr, tc), lambda i, j: (i, j))
        out_spec = pl.BlockSpec((tr, tc), lambda i, j: (i, j))
        semantics = ("parallel", "parallel")
    return pl.pallas_call(
        _copy_kernel,
        out_shape=jax.ShapeDtypeStruct((rows, cols), x2.dtype),
        grid=grid,
        in_specs=[in_spec],
        out_specs=out_spec,
        compiler_params=pltpu.CompilerParams(
            dimension_semantics=semantics,
            vmem_limit_bytes=_VMEM_LIMIT_BYTES,
        ),
    )(x2)


def _pallas_copy(x):
    """Identity copy of the full contiguous buffer via a bandwidth-friendly 2D slab."""
    total = x.size
    itemsize = jnp.dtype(x.dtype).itemsize
    sub = _sublane_multiple(itemsize)

    cols = _choose_cols(total, itemsize)
    if cols is not None:
        rows = total // cols
        # Dtype-aware row tile targeting ~8 MiB, multiple of the sublane pack.
        tr = max(sub, (_TARGET_TILE_BYTES // (cols * itemsize)) // sub * sub)
        tr = min(tr, rows)
        if rows % tr != 0:
            # Prefer an exact divisor (multiple of `sub`) so every store is an
            # unmasked full-width vst; fall back to cdiv + masked last tile.
            t = (tr // sub) * sub
            while t >= sub and rows % t != 0:
                t -= sub
            if t >= sub and rows % t == 0:
                tr = t
        x2 = x.reshape(rows, cols)
        return _tiled_copy_2d(x2, tr, cols)

    # Fallback: element count is not a multiple of 128. Lane-dense chunked copy
    # over a (1, total) view; ragged last tile is masked (correct, slower).
    tc = min(total, _TARGET_TILE_BYTES // itemsize)
    if tc < total:
        tc = max(_LANE, (tc // _LANE) * _LANE)
    x2 = x.reshape(1, total)
    return _tiled_copy_2d(x2, 1, tc)


def flatten(x, start_dim=1, end_dim=-1, *, use_pallas_copy=True):
    """Equivalent of torch.nn.Flatten(start_dim, end_dim).forward(x).

    NOTE: for a contiguous input this is a metadata-only reshape; pass
    `use_pallas_copy=False` to skip the HBM round trip entirely and keep the
    kernel only where it genuinely acts as a fusion point.
    """
    shape = x.shape
    nd = len(shape)
    if nd == 0:
        return x.reshape((1,))

    sd = start_dim + nd if start_dim < 0 else start_dim
    ed = end_dim + nd if end_dim < 0 else end_dim
    if not (0 <= sd < nd) or not (0 <= ed < nd):
        raise ValueError(
            f"flatten(): dims out of range for tensor of rank {nd}: "
            f"start_dim={start_dim}, end_dim={end_dim}")
    if sd > ed:
        raise ValueError("flatten(): start_dim cannot come after end_dim")

    flat = math.prod(shape[sd:ed + 1])
    out_shape = shape[:sd] + (flat,) + shape[ed + 1:]

    if not use_pallas_copy:
        return x.reshape(out_shape)

    y2 = _pallas_copy(x)
    return y2.reshape(out_shape)


if __name__ == "__main__":
    # Flatten has no parameters (nothing to initialize).
    key = jax.random.PRNGKey(0)
    N, C, H, W = 2, 4, 16, 16
    x = jax.random.normal(key, (N, C, H, W), dtype=jnp.float32)

    out = jax.block_until_ready(flatten(x))

    ref = x.reshape(N, C * H * W)  # reference semantics of torch flatten(1, -1)
    assert out.shape == (N, C * H * W), out.shape
    assert out.dtype == x.dtype
    assert jnp.array_equal(out, ref), "mismatch vs reference flatten"

    # Exercise the larger / multi-row tiling path once as well.
    x_big = jax.random.normal(jax.random.PRNGKey(1), (8, 32, 32, 32), dtype=jnp.float32)
    out_big = jax.block_until_ready(flatten(x_big))
    assert jnp.array_equal(out_big, x_big.reshape(8, 32 * 32 * 32))

    print("KERNEL_OK")
</pallas_src>

<mosaic_0001>
module attributes {stable_mosaic.version = 11 : i64} {
  func.func @_copy_kernel(%arg0: i32, %arg1: memref<1x2048xf32, #tpu.memory_space<vmem>>, %arg2: memref<1x2048xf32, #tpu.memory_space<vmem>>) attributes {dimension_semantics = [#tpu.dimension_semantics<parallel>], iteration_bounds = array<i64: 1>, scalar_prefetch = 0 : i64, scratch_operands = 0 : i64, tpu.core_type = #tpu.core_type<tc>, window_params = [{transform_indices = @transform_0, window_bounds = array<i64: 1, 2048>}, {transform_indices = @transform_1, window_bounds = array<i64: 1, 2048>}]} {
    %c0 = arith.constant 0 : index
    %c0_0 = arith.constant 0 : index
    %0 = vector.load %arg1[%c0, %c0_0] : memref<1x2048xf32, #tpu.memory_space<vmem>>, vector<1x2048xf32>
    %c0_1 = arith.constant 0 : index
    %c0_2 = arith.constant 0 : index
    %1 = vector.load %arg2[%c0_1, %c0_2] : memref<1x2048xf32, #tpu.memory_space<vmem>>, vector<1x2048xf32>
    tpu.vector_store %arg2[%c0_1, %c0_2], %0 {strides = array<i32>} : memref<1x2048xf32, #tpu.memory_space<vmem>>, vector<1x2048xf32>,
    return
  }
  func.func @transform_0(%arg0: i32) -> (i32, i32) {
    %c0_i32 = arith.constant 0 : i32
    %c0_i32_0 = arith.constant 0 : i32
    return %arg0, %c0_i32 : i32, i32
  }
  func.func @transform_1(%arg0: i32) -> (i32, i32) {
    %c0_i32 = arith.constant 0 : i32
    %c0_i32_0 = arith.constant 0 : i32
    return %arg0, %c0_i32 : i32, i32
  }
}

</mosaic_0001>

<llo_original>
// kernel: tpu_custom_call.1
$region0: #{tpu_custom_call.1}
  #allocation0 [shape = 'u32[]', space=smem, size = 0x4, offset = 0x4, fixed_abs, tag = 'smem constant byte address 0x4 - core index']
  #allocation1 [shape = 'u32[144,128]{1,0:T(1,128)}', space=vmem, size = 0x12000, scoped, tag = 'internal scratch']
  %s0 = inlined_call_operand.hbm [shape: f32[1,2048], index: 0, kind: input, shape index: {}]
  %s1 = inlined_call_operand.hbm [shape: f32[1,2048], index: 1, kind: output, shape index: {}]
  %s2 = sld [smem:[#allocation0]]
  $region18: #{tpu_custom_call.1} parent=0
    _
  %s4 = ssub.s32 1, %s2
  %s5 = scalar_select 0, %s4, %s2
  $region1: #{tpu_custom_call.1} parent=0
    #allocation2 [shape = 'u8[8192]{0}', space=vmem, size = 0x2000, scoped, tag = 'input window, operand 0, single buffered']
    #allocation3 [shape = 's32[1]{0}', space=sflag, size = 0x4, scoped, tag = 'scoped memory for tpu_custom_call.1']
    #allocation4 [shape = 's32[1]{0}', space=sflag, size = 0x4, scoped, tag = 'scoped memory for tpu_custom_call.1']
    #allocation5 [shape = 'u8[8192]{0}', space=vmem, size = 0x2000, scoped, tag = 'output window, operand 0, single buffered']
    %6 = vsyncpa [#allocation3], 0
    %7 = vsyncpa [#allocation4], 0
    // Predicated region
    $region2: #{tpu_custom_call.1} parent=1 // pred_check
      _
    $region3: #{tpu_custom_call.1} parent=1 // pred_check_branch
      %9 = sbr.rel (0) target = $region5
    $region4: #{tpu_custom_call.1} parent=1 // pred_region
      %s11 = ssub.s32 256, 256
      %12 = vsyncadd [#allocation3], %s11
      %s14 = sshll.u32 [#allocation2], 4
      %s15 = int_to_ptr.vmem [resolvable:$true] %s14
      %17 = dma.hbm_to_vmem [thread:$0]  %s0, 256, %s15, [#allocation3]
    $region5: #{tpu_custom_call.1} parent=1 // pred_fallthru
      _
    // Predicated region
    $region6: #{tpu_custom_call.1} parent=1 // pred_check
      _
    $region7: #{tpu_custom_call.1} parent=1 // pred_check_branch
      %19 = sbr.rel (0) target = $region9
    $region8: #{tpu_custom_call.1} parent=1 // pred_region
      %20 = dma.done [#allocation3], 256
    $region9: #{tpu_custom_call.1} parent=1 // pred_fallthru
      _
    %v21 = vld [vmem:[#allocation2] sm:$0xff]
    %v22 = vld [vmem:[#allocation2 + $0x8] sm:$0xff]
    %23 = vst [vmem:[#allocation5] sm:$0xff] %v21
    %24 = vst [vmem:[#allocation5 + $0x8] sm:$0xff] %v22
    // Predicated region
    $region10: #{tpu_custom_call.1} parent=1 // pred_check
      _
    $region11: #{tpu_custom_call.1} parent=1 // pred_check_branch
      %26 = sbr.rel (0) target = $region13
    $region12: #{tpu_custom_call.1} parent=1 // pred_region
      %s28 = ssub.s32 256, 256
      %29 = vsyncadd [#allocation4], %s28
      %s31 = sshll.u32 [#allocation5], 4
      %s32 = int_to_ptr.vmem [resolvable:$true] %s31
      %34 = dma.vmem_to_hbm [thread:$0]  %s32, 256, %s1, [#allocation4]
    $region13: #{tpu_custom_call.1} parent=1 // pred_fallthru
      _
    // Predicated region
    $region14: #{tpu_custom_call.1} parent=1 // pred_check
      _
    $region15: #{tpu_custom_call.1} parent=1 // pred_check_branch
      %36 = sbr.rel (0) target = $region17
    $region16: #{tpu_custom_call.1} parent=1 // pred_region
      %37 = dma.done [#allocation4], 256
    $region17: #{tpu_custom_call.1} parent=1 // pred_fallthru
      _
    %38 = vsyncpa [#allocation3], 1
    %39 = vsyncpa [#allocation4], 1

</llo_original>
